<compile_context>
chip_gen: v7x
topology: tpu7x:2x2x1
jax: 0.10.0
libtpu: 0.0.40
codegen_flags: <defaults>
</compile_context>

<pallas_src>
import jax
import jax.numpy as jnp
from jax.experimental import pallas as pl
from jax.experimental.pallas import tpu as pltpu  # noqa: F401  (not needed at this problem size)

DIM = 32          # embedding dim
HEADS = 8
MLP_RATIO = 4
HEAD_DIM = DIM // HEADS
HIDDEN = DIM * MLP_RATIO
SEQ = 8
BATCH = 2
EPS_LN = 1e-5
EPS_ATTN = 1e-6
VEC_W = 128       # packed bias slab width: one f32 lane tile
VEC_ROWS = 8      # one f32 sublane tile


def _elu_p1(x):
    # elu(x) + 1   (exp arg clamped so the discarded branch never overflows)
    return jnp.where(x > 0, x + 1.0, jnp.exp(jnp.minimum(x, 0.0)))


def _gelu(x):
    # tanh-approximation GELU
    return 0.5 * x * (1.0 + jnp.tanh(0.7978845608028654 * (x + 0.044715 * x * x * x)))


def _normalize(x):
    # LayerNorm core only; gamma/beta are folded into the downstream weights.
    mean = jnp.mean(x, axis=-1, keepdims=True)
    var = jnp.mean((x - mean) ** 2, axis=-1, keepdims=True)
    return (x - mean) * jax.lax.rsqrt(var + EPS_LN)


def block_kernel(x_ref, wqkv_ref, wo_ref, w1_ref, w2_ref, mask_ref, vec_ref, out_ref):
    b, n, d = x_ref.shape
    hid = w1_ref.shape[1]
    x = x_ref[...].reshape(b * n, d)                 # flatten batch into rows

    # ---- unpack the (8,128) bias slab: one vector per sublane row, lane-0 aligned ----
    b_qkv = vec_ref[0:1, 0:3 * d]                    # qkv bias (LN1 beta folded in)
    b_o = vec_ref[1:2, 0:d]
    b_1 = vec_ref[2:3, 0:hid]                        # mlp-in bias (LN2 beta folded in)
    b_2 = vec_ref[3:4, 0:d]

    # ---- attention sub-block (pre-norm; LN1 affine folded into wqkv/b_qkv) ----
    xn = _normalize(x)
    qkv = jnp.dot(xn, wqkv_ref[...], preferred_element_type=jnp.float32) + b_qkv
    q = _elu_p1(qkv[:, 0:d]).reshape(b, n, d)
    k = _elu_p1(qkv[:, d:2 * d]).reshape(b, n, d)
    v = qkv[:, 2 * d:3 * d].reshape(b, n, d)

    head_mask = mask_ref[...]                        # (d,d) block-diagonal, host-built

    # kv[b,i,e] = sum_n phi(k)[b,n,i] * v[b,n,e]  -- batched over the batch dim.
    kv = jax.lax.dot_general(k, v, (((1,), (1,)), ((0,), (0,))),
                             preferred_element_type=jnp.float32)          # (b, d, d)
    num = jax.lax.dot_general(q, kv * head_mask, (((2,), (1,)), ((0,), (0,))),
                              preferred_element_type=jnp.float32)         # (b, n, d)
    z = jnp.sum(k, axis=1, keepdims=True)                                 # (b, 1, d)
    den = jnp.dot((q * z).reshape(b * n, d), head_mask,
                  preferred_element_type=jnp.float32) + EPS_ATTN          # (b*n, d)
    # EUP approximate reciprocal + one Newton step (~fp32-divide accuracy, VPU-cheap).
    r = pl.reciprocal(den, approx=True)
    r = r * (2.0 - den * r)
    attn = num.reshape(b * n, d) * r

    attn = jnp.dot(attn, wo_ref[...], preferred_element_type=jnp.float32) + b_o
    x1 = x + attn                                    # residual

    # ---- MLP sub-block (pre-norm; LN2 affine folded into w1/b_1) ----
    x1n = _normalize(x1)
    h1 = _gelu(jnp.dot(x1n, w1_ref[...], preferred_element_type=jnp.float32) + b_1)
    mlp = jnp.dot(h1, w2_ref[...], preferred_element_type=jnp.float32) + b_2
    out_ref[...] = (x1 + mlp).reshape(b, n, d)       # residual


def pack_params(params):
    (ln1_g, ln1_b, wq, bq, wk, bk, wv, bv, wo, bo,
     ln2_g, ln2_b, w1, b1, w2, b2) = params
    D = wq.shape[0]
    H = w1.shape[1]
    head_dim = D // HEADS
    assert 3 * D <= VEC_W and H <= VEC_W and D <= VEC_W

    # Packed QKV projection with LayerNorm1's affine folded in:
    #   LN1(x) @ W + b == ((x-m)*rsqrt(v+eps)) @ (g[:,None]*W) + (beta @ W + b)
    w_qkv = jnp.concatenate([wq, wk, wv], axis=1)                         # (D, 3D)
    b_qkv = jnp.concatenate([bq, bk, bv], axis=1)                         # (1, 3D)
    w_qkv_f = ln1_g[0][:, None] * w_qkv
    b_qkv_f = ln1_b @ w_qkv + b_qkv

    # MLP input projection with LayerNorm2's affine folded in.
    w1_f = ln2_g[0][:, None] * w1
    b1_f = ln2_b @ w1 + b1

    # Bias slab: one f32 (8,128) tile, one vector per sublane row, lane-0 aligned.
    vecs = jnp.zeros((VEC_ROWS, VEC_W), jnp.float32)
    vecs = vecs.at[0, 0:3 * D].set(b_qkv_f[0])
    vecs = vecs.at[1, 0:D].set(bo[0])
    vecs = vecs.at[2, 0:H].set(b1_f[0])
    vecs = vecs.at[3, 0:D].set(b2[0])

    # Block-diagonal head mask: 1 where row and column belong to the same head.
    hid_of = jnp.arange(D) // head_dim
    head_mask = (hid_of[:, None] == hid_of[None, :]).astype(jnp.float32)

    return w_qkv_f, wo, w1_f, w2, head_mask, vecs


def linear_transformer_block(x, params):
    B, N, D = x.shape
    w_qkv, wo, w1, w2, head_mask, vecs = pack_params(params)
    # The whole problem (B*N = 16 rows, ~60 KiB of operands) fits in VMEM many
    # times over on every TPU generation, so run it as a single gridless
    # invocation: no per-step pipeline overhead, no megacore split, and no
    # double-buffering of grid-invariant weights.
    return pl.pallas_call(
        block_kernel,
        out_shape=jax.ShapeDtypeStruct((B, N, D), jnp.float32),
    )(x, w_qkv, wo, w1, w2, head_mask, vecs)


def init_params(key):
    ks = jax.random.split(key, 16)
    s = 0.02

    def nrm(k, shape, scale):
        return scale * jax.random.normal(k, shape, jnp.float32)

    # Non-trivial LN affines and biases so that the folding/packing is exercised.
    ln1_g = 1.0 + nrm(ks[0], (1, DIM), 0.1)
    ln1_b = nrm(ks[1], (1, DIM), 0.1)
    wq = nrm(ks[2], (DIM, DIM), s); bq = nrm(ks[3], (1, DIM), 0.05)
    wk = nrm(ks[4], (DIM, DIM), s); bk = nrm(ks[5], (1, DIM), 0.05)
    wv = nrm(ks[6], (DIM, DIM), s); bv = nrm(ks[7], (1, DIM), 0.05)
    wo = nrm(ks[8], (DIM, DIM), s); bo = nrm(ks[9], (1, DIM), 0.05)
    ln2_g = 1.0 + nrm(ks[10], (1, DIM), 0.1)
    ln2_b = nrm(ks[11], (1, DIM), 0.1)
    w1 = nrm(ks[12], (DIM, HIDDEN), s); b1 = nrm(ks[13], (1, HIDDEN), 0.05)
    w2 = nrm(ks[14], (HIDDEN, DIM), s); b2 = nrm(ks[15], (1, DIM), 0.05)
    return (ln1_g, ln1_b, wq, bq, wk, bk, wv, bv, wo, bo,
            ln2_g, ln2_b, w1, b1, w2, b2)


def reference(x, params):
    (ln1_g, ln1_b, wq, bq, wk, bk, wv, bv, wo, bo,
     ln2_g, ln2_b, w1, b1, w2, b2) = params

    def ln(u, g, b):
        m = u.mean(-1, keepdims=True)
        v = ((u - m) ** 2).mean(-1, keepdims=True)
        return (u - m) / jnp.sqrt(v + EPS_LN) * g + b

    xn = ln(x, ln1_g[0], ln1_b[0])
    q = xn @ wq + bq[0]
    k = xn @ wk + bk[0]
    v = xn @ wv + bv[0]
    B, N, D = x.shape
    q = _elu_p1(q.reshape(B, N, HEADS, HEAD_DIM))
    k = _elu_p1(k.reshape(B, N, HEADS, HEAD_DIM))
    v = v.reshape(B, N, HEADS, HEAD_DIM)
    kv = jnp.einsum('bnhd,bnhe->bhde', k, v)
    z = jnp.einsum('bnhd->bhd', k)
    num = jnp.einsum('bnhd,bhde->bnhe', q, kv)
    den = jnp.einsum('bnhd,bhd->bnh', q, z)[..., None] + EPS_ATTN
    attn = (num / den).reshape(B, N, D)
    x1 = x + attn @ wo + bo[0]
    x1n = ln(x1, ln2_g[0], ln2_b[0])
    h = _gelu(x1n @ w1 + b1[0])
    return x1 + h @ w2 + b2[0]


if __name__ == "__main__":
    key = jax.random.PRNGKey(0)
    kx, kp = jax.random.split(key)
    x = jax.random.normal(kx, (BATCH, SEQ, DIM), jnp.float32)
    params = init_params(kp)

    out = linear_transformer_block(x, params)
    out = jax.block_until_ready(out)

    ref = reference(x, params)
    assert out.shape == (BATCH, SEQ, DIM)
    assert jnp.allclose(out, ref, atol=5e-4, rtol=5e-4), \
        f"max err {jnp.max(jnp.abs(out - ref))}"
    print("KERNEL_OK")
</pallas_src>

<mosaic_0001>
module attributes {stable_mosaic.version = 11 : i64} {
  func.func @block_kernel(%arg0: memref<2x8x32xf32, #tpu.memory_space<vmem>>, %arg1: memref<32x96xf32, #tpu.memory_space<vmem>>, %arg2: memref<32x32xf32, #tpu.memory_space<vmem>>, %arg3: memref<32x128xf32, #tpu.memory_space<vmem>>, %arg4: memref<128x32xf32, #tpu.memory_space<vmem>>, %arg5: memref<32x32xf32, #tpu.memory_space<vmem>>, %arg6: memref<8x128xf32, #tpu.memory_space<vmem>>, %arg7: memref<2x8x32xf32, #tpu.memory_space<vmem>>) attributes {dimension_semantics = [], scalar_prefetch = 0 : i64, scratch_operands = 0 : i64, tpu.core_type = #tpu.core_type<tc>} {
    %c0 = arith.constant 0 : index
    %c0_0 = arith.constant 0 : index
    %c0_1 = arith.constant 0 : index
    %0 = vector.load %arg0[%c0, %c0_0, %c0_1] : memref<2x8x32xf32, #tpu.memory_space<vmem>>, vector<2x8x32xf32>
    %1 = vector.shape_cast %0 : vector<2x8x32xf32> to vector<16x32xf32>
    %c0_2 = arith.constant 0 : index
    %c0_3 = arith.constant 0 : index
    %2 = vector.load %arg6[%c0_2, %c0_3] : memref<8x128xf32, #tpu.memory_space<vmem>>, vector<1x96xf32>
    %c1 = arith.constant 1 : index
    %c0_4 = arith.constant 0 : index
    %3 = vector.load %arg6[%c1, %c0_4] : memref<8x128xf32, #tpu.memory_space<vmem>>, vector<1x32xf32>
    %c2 = arith.constant 2 : index
    %c0_5 = arith.constant 0 : index
    %4 = vector.load %arg6[%c2, %c0_5] : memref<8x128xf32, #tpu.memory_space<vmem>>, vector<1x128xf32>
    %c3 = arith.constant 3 : index
    %c0_6 = arith.constant 0 : index
    %5 = vector.load %arg6[%c3, %c0_6] : memref<8x128xf32, #tpu.memory_space<vmem>>, vector<1x32xf32>
    %cst = arith.constant dense<0.000000e+00> : vector<16xf32>
    %6 = vector.multi_reduction <add>, %1, %cst [1] : vector<16x32xf32> to vector<16xf32>
    %7 = vector.shape_cast %6 : vector<16xf32> to vector<16x1xf32>
    %cst_7 = arith.constant 3.200000e+01 : f32
    %8 = vector.broadcast %cst_7 : f32 to vector<16x1xf32>
    %9 = arith.divf %7, %8 : vector<16x1xf32>
    %10 = vector.broadcast %9 : vector<16x1xf32> to vector<16x32xf32>
    %11 = arith.subf %1, %10 : vector<16x32xf32>
    %12 = arith.mulf %11, %11 : vector<16x32xf32>
    %cst_8 = arith.constant dense<0.000000e+00> : vector<16xf32>
    %13 = vector.multi_reduction <add>, %12, %cst_8 [1] : vector<16x32xf32> to vector<16xf32>
    %14 = vector.shape_cast %13 : vector<16xf32> to vector<16x1xf32>
    %cst_9 = arith.constant 3.200000e+01 : f32
    %15 = vector.broadcast %cst_9 : f32 to vector<16x1xf32>
    %16 = arith.divf %14, %15 : vector<16x1xf32>
    %17 = vector.broadcast %9 : vector<16x1xf32> to vector<16x32xf32>
    %18 = arith.subf %1, %17 : vector<16x32xf32>
    %cst_10 = arith.constant 9.99999974E-6 : f32
    %19 = vector.broadcast %cst_10 : f32 to vector<16x1xf32>
    %20 = arith.addf %16, %19 : vector<16x1xf32>
    %21 = math.rsqrt %20 : vector<16x1xf32>
    %22 = vector.broadcast %21 : vector<16x1xf32> to vector<16x32xf32>
    %23 = arith.mulf %18, %22 : vector<16x32xf32>
    %c0_11 = arith.constant 0 : index
    %c0_12 = arith.constant 0 : index
    %24 = vector.load %arg1[%c0_11, %c0_12] : memref<32x96xf32, #tpu.memory_space<vmem>>, vector<32x96xf32>
    %cst_13 = arith.constant dense<0.000000e+00> : vector<16x96xf32>
    %25 = tpu.matmul %23, %24, %cst_13 {dimension_numbers = #tpu.dot_dimension_numbers<[1], [0], [0], [1], [0, 0, 1, 1], [], []>} : vector<16x32xf32>, vector<32x96xf32>, vector<16x96xf32> -> vector<16x96xf32>
    %26 = vector.broadcast %2 : vector<1x96xf32> to vector<16x96xf32>
    %27 = arith.addf %25, %26 : vector<16x96xf32>
    %28 = vector.extract_strided_slice %27 {offsets = [0, 0], sizes = [16, 32], strides = [1, 1]} : vector<16x96xf32> to vector<16x32xf32>
    %cst_14 = arith.constant 0.000000e+00 : f32
    %29 = vector.broadcast %cst_14 : f32 to vector<16x32xf32>
    %30 = arith.cmpf ogt, %28, %29 : vector<16x32xf32>
    %cst_15 = arith.constant 1.000000e+00 : f32
    %31 = vector.broadcast %cst_15 : f32 to vector<16x32xf32>
    %32 = arith.addf %28, %31 : vector<16x32xf32>
    %cst_16 = arith.constant 0.000000e+00 : f32
    %33 = vector.broadcast %cst_16 : f32 to vector<16x32xf32>
    %34 = arith.minimumf %28, %33 : vector<16x32xf32>
    %35 = math.exp %34 : vector<16x32xf32>
    %36 = arith.select %30, %32, %35 : vector<16x32xi1>, vector<16x32xf32>
    %37 = vector.shape_cast %36 : vector<16x32xf32> to vector<2x8x32xf32>
    %38 = vector.extract_strided_slice %27 {offsets = [0, 32], sizes = [16, 32], strides = [1, 1]} : vector<16x96xf32> to vector<16x32xf32>
    %cst_17 = arith.constant 0.000000e+00 : f32
    %39 = vector.broadcast %cst_17 : f32 to vector<16x32xf32>
    %40 = arith.cmpf ogt, %38, %39 : vector<16x32xf32>
    %cst_18 = arith.constant 1.000000e+00 : f32
    %41 = vector.broadcast %cst_18 : f32 to vector<16x32xf32>
    %42 = arith.addf %38, %41 : vector<16x32xf32>
    %cst_19 = arith.constant 0.000000e+00 : f32
    %43 = vector.broadcast %cst_19 : f32 to vector<16x32xf32>
    %44 = arith.minimumf %38, %43 : vector<16x32xf32>
    %45 = math.exp %44 : vector<16x32xf32>
    %46 = arith.select %40, %42, %45 : vector<16x32xi1>, vector<16x32xf32>
    %47 = vector.shape_cast %46 : vector<16x32xf32> to vector<2x8x32xf32>
    %48 = vector.extract_strided_slice %27 {offsets = [0, 64], sizes = [16, 32], strides = [1, 1]} : vector<16x96xf32> to vector<16x32xf32>
    %49 = vector.shape_cast %48 : vector<16x32xf32> to vector<2x8x32xf32>
    %c0_20 = arith.constant 0 : index
    %c0_21 = arith.constant 0 : index
    %50 = vector.load %arg5[%c0_20, %c0_21] : memref<32x32xf32, #tpu.memory_space<vmem>>, vector<32x32xf32>
    %cst_22 = arith.constant dense<0.000000e+00> : vector<2x32x32xf32>
    %51 = tpu.matmul %47, %49, %cst_22 {dimension_numbers = #tpu.dot_dimension_numbers<[1], [1], [2], [2], [0, 0, 0, 2, 1, 2], [0], [0]>} : vector<2x8x32xf32>, vector<2x8x32xf32>, vector<2x32x32xf32> -> vector<2x32x32xf32>
    %52 = vector.shape_cast %50 : vector<32x32xf32> to vector<1x32x32xf32>
    %53 = vector.broadcast %52 : vector<1x32x32xf32> to vector<2x32x32xf32>
    %54 = arith.mulf %51, %53 : vector<2x32x32xf32>
    %cst_23 = arith.constant dense<0.000000e+00> : vector<2x8x32xf32>
    %55 = tpu.matmul %37, %54, %cst_23 {dimension_numbers = #tpu.dot_dimension_numbers<[2], [1], [1], [2], [0, 0, 0, 1, 1, 2], [0], [0]>} : vector<2x8x32xf32>, vector<2x32x32xf32>, vector<2x8x32xf32> -> vector<2x8x32xf32>
    %cst_24 = arith.constant dense<0.000000e+00> : vector<2x32xf32>
    %56 = vector.multi_reduction <add>, %47, %cst_24 [1] : vector<2x8x32xf32> to vector<2x32xf32>
    %57 = vector.shape_cast %56 : vector<2x32xf32> to vector<2x1x32xf32>
    %58 = vector.broadcast %57 : vector<2x1x32xf32> to vector<2x8x32xf32>
    %59 = arith.mulf %37, %58 : vector<2x8x32xf32>
    %60 = vector.shape_cast %59 : vector<2x8x32xf32> to vector<16x32xf32>
    %cst_25 = arith.constant dense<0.000000e+00> : vector<16x32xf32>
    %61 = tpu.matmul %60, %50, %cst_25 {dimension_numbers = #tpu.dot_dimension_numbers<[1], [0], [0], [1], [0, 0, 1, 1], [], []>} : vector<16x32xf32>, vector<32x32xf32>, vector<16x32xf32> -> vector<16x32xf32>
    %cst_26 = arith.constant 9.99999997E-7 : f32
    %62 = vector.broadcast %cst_26 : f32 to vector<16x32xf32>
    %63 = arith.addf %61, %62 : vector<16x32xf32>
    %64 = tpu.reciprocal %63 {approx = true} : vector<16x32xf32> -> vector<16x32xf32>
    %65 = arith.mulf %63, %64 : vector<16x32xf32>
    %cst_27 = arith.constant 2.000000e+00 : f32
    %66 = vector.broadcast %cst_27 : f32 to vector<16x32xf32>
    %67 = arith.subf %66, %65 : vector<16x32xf32>
    %68 = arith.mulf %64, %67 : vector<16x32xf32>
    %69 = vector.shape_cast %55 : vector<2x8x32xf32> to vector<16x32xf32>
    %70 = arith.mulf %69, %68 : vector<16x32xf32>
    %c0_28 = arith.constant 0 : index
    %c0_29 = arith.constant 0 : index
    %71 = vector.load %arg2[%c0_28, %c0_29] : memref<32x32xf32, #tpu.memory_space<vmem>>, vector<32x32xf32>
    %cst_30 = arith.constant dense<0.000000e+00> : vector<16x32xf32>
    %72 = tpu.matmul %70, %71, %cst_30 {dimension_numbers = #tpu.dot_dimension_numbers<[1], [0], [0], [1], [0, 0, 1, 1], [], []>} : vector<16x32xf32>, vector<32x32xf32>, vector<16x32xf32> -> vector<16x32xf32>
    %73 = vector.broadcast %3 : vector<1x32xf32> to vector<16x32xf32>
    %74 = arith.addf %72, %73 : vector<16x32xf32>
    %75 = arith.addf %1, %74 : vector<16x32xf32>
    %cst_31 = arith.constant dense<0.000000e+00> : vector<16xf32>
    %76 = vector.multi_reduction <add>, %75, %cst_31 [1] : vector<16x32xf32> to vector<16xf32>
    %77 = vector.shape_cast %76 : vector<16xf32> to vector<16x1xf32>
    %cst_32 = arith.constant 3.200000e+01 : f32
    %78 = vector.broadcast %cst_32 : f32 to vector<16x1xf32>
    %79 = arith.divf %77, %78 : vector<16x1xf32>
    %80 = vector.broadcast %79 : vector<16x1xf32> to vector<16x32xf32>
    %81 = arith.subf %75, %80 : vector<16x32xf32>
    %82 = arith.mulf %81, %81 : vector<16x32xf32>
    %cst_33 = arith.constant dense<0.000000e+00> : vector<16xf32>
    %83 = vector.multi_reduction <add>, %82, %cst_33 [1] : vector<16x32xf32> to vector<16xf32>
    %84 = vector.shape_cast %83 : vector<16xf32> to vector<16x1xf32>
    %cst_34 = arith.constant 3.200000e+01 : f32
    %85 = vector.broadcast %cst_34 : f32 to vector<16x1xf32>
    %86 = arith.divf %84, %85 : vector<16x1xf32>
    %87 = vector.broadcast %79 : vector<16x1xf32> to vector<16x32xf32>
    %88 = arith.subf %75, %87 : vector<16x32xf32>
    %cst_35 = arith.constant 9.99999974E-6 : f32
    %89 = vector.broadcast %cst_35 : f32 to vector<16x1xf32>
    %90 = arith.addf %86, %89 : vector<16x1xf32>
    %91 = math.rsqrt %90 : vector<16x1xf32>
    %92 = vector.broadcast %91 : vector<16x1xf32> to vector<16x32xf32>
    %93 = arith.mulf %88, %92 : vector<16x32xf32>
    %c0_36 = arith.constant 0 : index
    %c0_37 = arith.constant 0 : index
    %94 = vector.load %arg3[%c0_36, %c0_37] : memref<32x128xf32, #tpu.memory_space<vmem>>, vector<32x128xf32>
    %cst_38 = arith.constant dense<0.000000e+00> : vector<16x128xf32>
    %95 = tpu.matmul %93, %94, %cst_38 {dimension_numbers = #tpu.dot_dimension_numbers<[1], [0], [0], [1], [0, 0, 1, 1], [], []>} : vector<16x32xf32>, vector<32x128xf32>, vector<16x128xf32> -> vector<16x128xf32>
    %96 = vector.broadcast %4 : vector<1x128xf32> to vector<16x128xf32>
    %97 = arith.addf %95, %96 : vector<16x128xf32>
    %cst_39 = arith.constant 5.000000e-01 : f32
    %98 = vector.broadcast %cst_39 : f32 to vector<16x128xf32>
    %99 = arith.mulf %98, %97 : vector<16x128xf32>
    %cst_40 = arith.constant 4.471500e-02 : f32
    %100 = vector.broadcast %cst_40 : f32 to vector<16x128xf32>
    %101 = arith.mulf %100, %97 : vector<16x128xf32>
    %102 = arith.mulf %101, %97 : vector<16x128xf32>
    %103 = arith.mulf %102, %97 : vector<16x128xf32>
    %104 = arith.addf %97, %103 : vector<16x128xf32>
    %cst_41 = arith.constant 0.797884583 : f32
    %105 = vector.broadcast %cst_41 : f32 to vector<16x128xf32>
    %106 = arith.mulf %105, %104 : vector<16x128xf32>
    %107 = math.tanh %106 : vector<16x128xf32>
    %cst_42 = arith.constant 1.000000e+00 : f32
    %108 = vector.broadcast %cst_42 : f32 to vector<16x128xf32>
    %109 = arith.addf %108, %107 : vector<16x128xf32>
    %110 = arith.mulf %99, %109 : vector<16x128xf32>
    %c0_43 = arith.constant 0 : index
    %c0_44 = arith.constant 0 : index
    %111 = vector.load %arg4[%c0_43, %c0_44] : memref<128x32xf32, #tpu.memory_space<vmem>>, vector<128x32xf32>
    %cst_45 = arith.constant dense<0.000000e+00> : vector<16x32xf32>
    %112 = tpu.matmul %110, %111, %cst_45 {dimension_numbers = #tpu.dot_dimension_numbers<[1], [0], [0], [1], [0, 0, 1, 1], [], []>} : vector<16x128xf32>, vector<128x32xf32>, vector<16x32xf32> -> vector<16x32xf32>
    %113 = vector.broadcast %5 : vector<1x32xf32> to vector<16x32xf32>
    %114 = arith.addf %112, %113 : vector<16x32xf32>
    %115 = arith.addf %75, %114 : vector<16x32xf32>
    %116 = vector.shape_cast %115 : vector<16x32xf32> to vector<2x8x32xf32>
    %c0_46 = arith.constant 0 : index
    %c0_47 = arith.constant 0 : index
    %c0_48 = arith.constant 0 : index
    %117 = vector.load %arg7[%c0_46, %c0_47, %c0_48] : memref<2x8x32xf32, #tpu.memory_space<vmem>>, vector<2x8x32xf32>
    tpu.vector_store %arg7[%c0_46, %c0_47, %c0_48], %116 {strides = array<i32>} : memref<2x8x32xf32, #tpu.memory_space<vmem>>, vector<2x8x32xf32>,
    return
  }
}

</mosaic_0001>

<llo_original>
// kernel: tpu_custom_call.1
$region0: #{tpu_custom_call.1}
  #allocation0 [shape = 'u32[]', space=smem, size = 0x4, offset = 0x4, fixed_abs, tag = 'smem constant byte address 0x4 - core index']
  #allocation1 [shape = 'u32[144,128]{1,0:T(1,128)}', space=vmem, size = 0x12000, scoped, tag = 'internal scratch']
  %s0 = inlined_call_operand.vmem [shape: f32[2,8,32], index: 0, kind: input, shape index: {}]
  %s1 = inlined_call_operand.vmem [shape: f32[32,96], index: 1, kind: input, shape index: {}]
  %s2 = inlined_call_operand.vmem [shape: f32[32,32], index: 2, kind: input, shape index: {}]
  %s3 = inlined_call_operand.vmem [shape: f32[32,128], index: 3, kind: input, shape index: {}]
  %s4 = inlined_call_operand.vmem [shape: f32[128,32], index: 4, kind: input, shape index: {}]
  %s5 = inlined_call_operand.vmem [shape: f32[32,32], index: 5, kind: input, shape index: {}]
  %s6 = inlined_call_operand.vmem [shape: f32[8,128], index: 6, kind: input, shape index: {}]
  %s7 = inlined_call_operand.hbm [shape: f32[2,8,32], index: 7, kind: output, shape index: {}]
  %s8 = sld [smem:[#allocation0]]
  $region38: #{tpu_custom_call.1} parent=0
    _
  %s10 = ssub.s32 1, %s8
  %s11 = scalar_select 0, %s10, %s8
  $region1: #{tpu_custom_call.1} parent=0
    #allocation2 [shape = 'u8[8192]{0}', space=vmem, size = 0x2000, scoped, tag = 'output window, operand 0, single buffered']
    #allocation3 [shape = 's32[1]{0}', space=sflag, size = 0x4, scoped, tag = 'scoped memory for tpu_custom_call.1']
    %12 = vsyncpa [#allocation3], 0
    // Predicated region
    $region2: #{tpu_custom_call.1} parent=1 // pred_check
      _
    $region3: #{tpu_custom_call.1} parent=1 // pred_check_branch
      %14 = sbr.rel (0) target = $region5
    $region4: #{tpu_custom_call.1} parent=1 // pred_region
      _
    $region5: #{tpu_custom_call.1} parent=1 // pred_fallthru
      _
    // Predicated region
    $region6: #{tpu_custom_call.1} parent=1 // pred_check
      _
    $region7: #{tpu_custom_call.1} parent=1 // pred_check_branch
      %16 = sbr.rel (0) target = $region9
    $region8: #{tpu_custom_call.1} parent=1 // pred_region
      _
    $region9: #{tpu_custom_call.1} parent=1 // pred_fallthru
      _
    // Predicated region
    $region10: #{tpu_custom_call.1} parent=1 // pred_check
      _
    $region11: #{tpu_custom_call.1} parent=1 // pred_check_branch
      %18 = sbr.rel (0) target = $region13
    $region12: #{tpu_custom_call.1} parent=1 // pred_region
      _
    $region13: #{tpu_custom_call.1} parent=1 // pred_fallthru
      _
    // Predicated region
    $region14: #{tpu_custom_call.1} parent=1 // pred_check
      _
    $region15: #{tpu_custom_call.1} parent=1 // pred_check_branch
      %20 = sbr.rel (0) target = $region17
    $region16: #{tpu_custom_call.1} parent=1 // pred_region
      _
    $region17: #{tpu_custom_call.1} parent=1 // pred_fallthru
      _
    // Predicated region
    $region18: #{tpu_custom_call.1} parent=1 // pred_check
      _
    $region19: #{tpu_custom_call.1} parent=1 // pred_check_branch
      %22 = sbr.rel (0) target = $region21
    $region20: #{tpu_custom_call.1} parent=1 // pred_region
      _
    $region21: #{tpu_custom_call.1} parent=1 // pred_fallthru
      _
    // Predicated region
    $region22: #{tpu_custom_call.1} parent=1 // pred_check
      _
    $region23: #{tpu_custom_call.1} parent=1 // pred_check_branch
      %24 = sbr.rel (0) target = $region25
    $region24: #{tpu_custom_call.1} parent=1 // pred_region
      _
    $region25: #{tpu_custom_call.1} parent=1 // pred_fallthru
      _
    // Predicated region
    $region26: #{tpu_custom_call.1} parent=1 // pred_check
      _
    $region27: #{tpu_custom_call.1} parent=1 // pred_check_branch
      %26 = sbr.rel (0) target = $region29
    $region28: #{tpu_custom_call.1} parent=1 // pred_region
      _
    $region29: #{tpu_custom_call.1} parent=1 // pred_fallthru
      _
    %v27 = vld [vmem:[%s0] sm:$0xff]
    %v28 = vld [vmem:[%s0 + $0x8] sm:$0xff]
    %v29 = vld [vmem:[%s6] sm:$0x1]
    %v30 = vld [vmem:[%s6 + $0x1] sm:$0x1]
    %v31 = vld [vmem:[%s6 + $0x2] sm:$0x1]
    %v32 = vld [vmem:[%s6 + $0x3] sm:$0x1]
    %vm33 = vcmask 261120
    %v34 = vsel %vm33, %v27, 0.0
    %35 = vadd.xlane.f32.xlu0 %v34
    %v36 = vpop.xlane.xlu0 %35
    %v37 = vsel %vm33, %v28, 0.0
    %38 = vadd.xlane.f32.xlu0 %v37
    %v39 = vpop.xlane.xlu0 %38
    %v40 = vrcp.pop 32.0
    %v41 = vmul.f32 %v36, %v40
    %v42 = vmul.f32 %v39, %v40
    %v43 = vsub.f32 %v27, %v41
    %v44 = vsub.f32 %v28, %v42
    %v45 = vmul.f32 %v43, %v43
    %v46 = vmul.f32 %v44, %v44
    %v47 = vsel %vm33, %v45, 0.0
    %48 = vadd.xlane.f32.xlu0 %v47
    %v49 = vpop.xlane.xlu0 %48
    %v50 = vsel %vm33, %v46, 0.0
    %51 = vadd.xlane.f32.xlu0 %v50
    %v52 = vpop.xlane.xlu0 %51
    %v53 = vmul.f32 %v49, %v40
    %v54 = vmul.f32 %v52, %v40
    %v55 = vadd.f32 %v53, 1e-05
    %v56 = vadd.f32 %v54, 1e-05
    %v57 = vrsqrt.pop %v55
    %v58 = vrsqrt.pop %v56
    %v59 = vmul.f32 %v43, %v57
    %v60 = vmul.f32 %v44, %v58
    %v61 = vld [vmem:[%s1] sm:$0xff]
    %v62 = vld [vmem:[%s1 + $0x8] sm:$0xff]
    %v63 = vld [vmem:[%s1 + $0x10] sm:$0xff]
    %v64 = vld [vmem:[%s1 + $0x18] sm:$0xff]
    %v65 = vlaneseq
    %v66 = vshrl.u32 %v65, 7
    %v67 = vsub.s32 0, %v66
    %v68 = vrot.slane %v29, %v67
    %v70 = vsel %vm33, %v59, 0
    %v73 = vsel %vm33, %v60, 0
    %75 = vmatprep.subr.mxu0 0.0
    %76 = vmatpush1.msra.mxu0 %v61
    %77 = vmatprep.subr.mxu0 0.0
    %78 = vmatpush1.msra.mxu0 %v62
    %79 = vmatprep.subr.mxu0 0.0
    %80 = vmatpush1.msra.mxu0 %v63
    %81 = vmatprep.subr.mxu0 0.0
    %82 = vmatpush1.msra.mxu0 %v64
    %83 = vmatprep.subr.mxu0 0.0
    %84 = vmatpush1.msra.mxu0 0.0
    %85 = vmatprep.subr.mxu0 0.0
    %86 = vmatpush1.msra.mxu0 0.0
    %87 = vmatprep.subr.mxu0 0.0
    %88 = vmatpush1.msra.mxu0 0.0
    %89 = vmatprep.subr.mxu0 0.0
    %90 = vmatpush1.msra.mxu0 0.0
    %91 = vmatprep.subr.mxu0 0.0
    %92 = vmatpush1.msra.mxu0 0.0
    %93 = vmatprep.subr.mxu0 0.0
    %94 = vmatpush1.msra.mxu0 0.0
    %95 = vmatprep.subr.mxu0 0.0
    %96 = vmatpush1.msra.mxu0 0.0
    %97 = vmatprep.subr.mxu0 0.0
    %98 = vmatpush1.msra.mxu0 0.0
    %99 = vmatprep.subr.mxu0 0.0
    %100 = vmatpush1.msra.mxu0 0.0
    %101 = vmatprep.subr.mxu0 0.0
    %102 = vmatpush1.msra.mxu0 0.0
    %103 = vmatprep.subr.mxu0 0.0
    %104 = vmatpush1.msra.mxu0 0.0
    %105 = vmatprep.subr.mxu0 0.0
    %106 = vmatpush1.msra.mxu0 0.0
    %107 = vmatprep.subr.mxu0 0.0
    %108 = vmatpush1.msra.mxu0 0.0
    %109 = vmatprep.subr.mxu0 0.0
    %110 = vmatpush1.msra.mxu0 0.0
    %111 = vmatprep.subr.mxu0 0.0
    %112 = vmatpush1.msra.mxu0 0.0
    %113 = vmatprep.subr.mxu0 0.0
    %114 = vmatpush1.msra.mxu0 0.0
    %115 = vmatprep.subr.mxu0 0.0
    %116 = vmatpush1.msra.mxu0 0.0
    %117 = vmatprep.subr.mxu0 0.0
    %118 = vmatpush1.msra.mxu0 0.0
    %119 = vmatprep.subr.mxu0 0.0
    %120 = vmatpush1.msra.mxu0 0.0
    %121 = vmatprep.subr.mxu0 0.0
    %122 = vmatpush1.msra.mxu0 0.0
    %123 = vmatprep.subr.mxu0 0.0
    %124 = vmatpush1.msra.mxu0 0.0
    %125 = vmatprep.subr.mxu0 0.0
    %126 = vmatpush1.msra.mxu0 0.0
    %127 = vmatprep.subr.mxu0 0.0
    %128 = vmatpush1.msra.mxu0 0.0
    %129 = vmatprep.subr.mxu0 0.0
    %130 = vmatpush1.msra.mxu0 0.0
    %131 = vmatprep.subr.mxu0 0.0
    %132 = vmatpush1.msra.mxu0 0.0
    %133 = vmatprep.subr.mxu0 0.0
    %134 = vmatpush1.msra.mxu0 0.0
    %135 = vmatprep.subr.mxu0 0.0
    %136 = vmatpush1.msra.mxu0 0.0
    %137 = vmatprep.subr.mxu0 0.0
    %138 = vmatpush1.msra.mxu0 0.0
    %139 = vmatprep.mubr.f32.mxu0 0.0
    %140 = vmatmul.mubr.f32.gmra.mrb[0].mxu0 %v70
    %v141 = vpop.f32.mrb[0].mxu0
    %v142 = vadd.f32 %v68, %v141
    %v143 = vpop.f32.mrb[0].mxu0
    %144 = vmatprep.mubr.f32.mxu0 0.0
    %145 = vmatmul.mubr.f32.gmra.mrb[0].mxu0 %v73
    %v146 = vpop.f32.mrb[0].mxu0
    %v147 = vadd.f32 %v68, %v146
    %v148 = vpop.f32.mrb[0].mxu0
    %149 = vdwg.mxu0
    %vm150 = vcmp.gt.f32.partialorder %v142, 0.0
    %vm151 = vcmp.gt.f32.partialorder %v147, 0.0
    %v152 = vadd.f32 %v142, 1.0
    %v153 = vadd.f32 %v147, 1.0
    %v154 = vmin.f32 %v142, 0.0
    %v155 = vmin.f32 %v147, 0.0
    %v156 = vmul.f32 %v154, 1.442695
    %v157 = vpow.pop %v156
    %v158 = vmul.f32 %v155, 1.442695
    %v159 = vpow.pop %v158
    %v160 = vsel %vm150, %v152, %v157
    %v161 = vsel %vm151, %v153, %v159
    %v162 = vld [vmem:[%s5] sm:$0xff]
    %v163 = vld [vmem:[%s5 + $0x8] sm:$0xff]
    %v164 = vld [vmem:[%s5 + $0x10] sm:$0xff]
    %v165 = vld [vmem:[%s5 + $0x18] sm:$0xff]
    %167 = vrot.lane.b32.xlu0 %v160, 96
    %v168 = vpop.permute.xlu0 %167
    %170 = vxpose.xlu0.b32.start [1/16] %v168, 128
    %171 = vxpose.xlu0.b32.cont [2/16] 0.0, 128
    %172 = vxpose.xlu0.b32.cont [3/16] 0.0, 128
    %173 = vxpose.xlu0.b32.cont [4/16] 0.0, 128
    %174 = vxpose.xlu0.b32.cont [5/16] 0.0, 128
    %175 = vxpose.xlu0.b32.cont [6/16] 0.0, 128
    %176 = vxpose.xlu0.b32.cont [7/16] 0.0, 128
    %177 = vxpose.xlu0.b32.cont [8/16] 0.0, 128
    %178 = vxpose.xlu0.b32.cont [9/16] 0.0, 128
    %179 = vxpose.xlu0.b32.cont [10/16] 0.0, 128
    %180 = vxpose.xlu0.b32.cont [11/16] 0.0, 128
    %181 = vxpose.xlu0.b32.cont [12/16] 0.0, 128
    %182 = vxpose.xlu0.b32.cont [13/16] 0.0, 128
    %183 = vxpose.xlu0.b32.cont [14/16] 0.0, 128
    %184 = vxpose.xlu0.b32.cont [15/16] 0.0, 128
    %185 = vxpose.xlu0.b32.end [16/16] 0.0, 128
    %v186 = vpop.trf.xlu0
    %v187 = vpop.trf.xlu0
    %v188 = vpop.trf.xlu0
    %v189 = vpop.trf.xlu0
    %v190 = vpop.trf.xlu0
    %v191 = vpop.trf.xlu0
    %v192 = vpop.trf.xlu0
    %v193 = vpop.trf.xlu0
    %v194 = vpop.trf.xlu0
    %v195 = vpop.trf.xlu0
    %v196 = vpop.trf.xlu0
    %v197 = vpop.trf.xlu0
    %v198 = vpop.trf.xlu0
    %v199 = vpop.trf.xlu0
    %v200 = vpop.trf.xlu0
    %v201 = vpop.trf.xlu0
    %203 = vrot.lane.b32.xlu0 %v142, 64
    %v204 = vpop.permute.xlu0 %203
    %vm206 = vcmask 64512
    %v208 = vsel %vm206, %v186, 0
    %v211 = vsel %vm206, %v187, 0
    %v214 = vsel %vm206, %v188, 0
    %v217 = vsel %vm206, %v189, 0
    %219 = vmatprep.subr.mxu0 0.0
    %220 = vmatpush1.msra.mxu0 %v204
    %221 = vmatprep.subr.mxu0 0.0
    %222 = vmatpush1.msra.mxu0 0.0
    %223 = vmatprep.subr.mxu0 0.0
    %224 = vmatpush1.msra.mxu0 0.0
    %225 = vmatprep.subr.mxu0 0.0
    %226 = vmatpush1.msra.mxu0 0.0
    %227 = vmatprep.subr.mxu0 0.0
    %228 = vmatpush1.msra.mxu0 0.0
    %229 = vmatprep.subr.mxu0 0.0
    %230 = vmatpush1.msra.mxu0 0.0
    %231 = vmatprep.subr.mxu0 0.0
    %232 = vmatpush1.msra.mxu0 0.0
    %233 = vmatprep.subr.mxu0 0.0
    %234 = vmatpush1.msra.mxu0 0.0
    %235 = vmatprep.subr.mxu0 0.0
    %236 = vmatpush1.msra.mxu0 0.0
    %237 = vmatprep.subr.mxu0 0.0
    %238 = vmatpush1.msra.mxu0 0.0
    %239 = vmatprep.subr.mxu0 0.0
    %240 = vmatpush1.msra.mxu0 0.0
    %241 = vmatprep.subr.mxu0 0.0
    %242 = vmatpush1.msra.mxu0 0.0
    %243 = vmatprep.subr.mxu0 0.0
    %244 = vmatpush1.msra.mxu0 0.0
    %245 = vmatprep.subr.mxu0 0.0
    %246 = vmatpush1.msra.mxu0 0.0
    %247 = vmatprep.subr.mxu0 0.0
    %248 = vmatpush1.msra.mxu0 0.0
    %249 = vmatprep.subr.mxu0 0.0
    %250 = vmatpush1.msra.mxu0 0.0
    %251 = vmatprep.subr.mxu0 0.0
    %252 = vmatpush1.msra.mxu0 0.0
    %253 = vmatprep.subr.mxu0 0.0
    %254 = vmatpush1.msra.mxu0 0.0
    %255 = vmatprep.subr.mxu0 0.0
    %256 = vmatpush1.msra.mxu0 0.0
    %257 = vmatprep.subr.mxu0 0.0
    %258 = vmatpush1.msra.mxu0 0.0
    %259 = vmatprep.subr.mxu0 0.0
    %260 = vmatpush1.msra.mxu0 0.0
    %261 = vmatprep.subr.mxu0 0.0
    %262 = vmatpush1.msra.mxu0 0.0
    %263 = vmatprep.subr.mxu0 0.0
    %264 = vmatpush1.msra.mxu0 0.0
    %265 = vmatprep.subr.mxu0 0.0
    %266 = vmatpush1.msra.mxu0 0.0
    %267 = vmatprep.subr.mxu0 0.0
    %268 = vmatpush1.msra.mxu0 0.0
    %269 = vmatprep.subr.mxu0 0.0
    %270 = vmatpush1.msra.mxu0 0.0
    %271 = vmatprep.subr.mxu0 0.0
    %272 = vmatpush1.msra.mxu0 0.0
    %273 = vmatprep.subr.mxu0 0.0
    %274 = vmatpush1.msra.mxu0 0.0
    %275 = vmatprep.subr.mxu0 0.0
    %276 = vmatpush1.msra.mxu0 0.0
    %277 = vmatprep.subr.mxu0 0.0
    %278 = vmatpush1.msra.mxu0 0.0
    %279 = vmatprep.subr.mxu0 0.0
    %280 = vmatpush1.msra.mxu0 0.0
    %281 = vmatprep.subr.mxu0 0.0
    %282 = vmatpush1.msra.mxu0 0.0
    %283 = vmatprep.mubr.f32.mxu0 0.0
    %284 = vmatmul.mubr.f32.gmra.mrb[0].mxu0 %v208
    %v285 = vpop.f32.mrb[0].mxu0
    %v286 = vadd.f32 0.0, %v285
    %v287 = vpop.f32.mrb[0].mxu0
    %288 = vmatprep.mubr.f32.mxu0 0.0
    %289 = vmatmul.mubr.f32.gmra.mrb[0].mxu0 %v211
    %v290 = vpop.f32.mrb[0].mxu0
    %v291 = vadd.f32 0.0, %v290
    %v292 = vpop.f32.mrb[0].mxu0
    %293 = vmatprep.mubr.f32.mxu0 0.0
    %294 = vmatmul.mubr.f32.gmra.mrb[0].mxu0 %v214
    %v295 = vpop.f32.mrb[0].mxu0
    %v296 = vadd.f32 0.0, %v295
    %v297 = vpop.f32.mrb[0].mxu0
    %298 = vmatprep.mubr.f32.mxu0 0.0
    %299 = vmatmul.mubr.f32.gmra.mrb[0].mxu0 %v217
    %v300 = vpop.f32.mrb[0].mxu0
    %v301 = vadd.f32 0.0, %v300
    %v302 = vpop.f32.mrb[0].mxu0
    %303 = vdwg.mxu0
    %305 = vrot.lane.b32.xlu0 %v161, 96
    %v306 = vpop.permute.xlu0 %305
    %308 = vxpose.xlu0.b32.start [1/16] %v306, 128
    %309 = vxpose.xlu0.b32.cont [2/16] 0.0, 128
    %310 = vxpose.xlu0.b32.cont [3/16] 0.0, 128
    %311 = vxpose.xlu0.b32.cont [4/16] 0.0, 128
    %312 = vxpose.xlu0.b32.cont [5/16] 0.0, 128
    %313 = vxpose.xlu0.b32.cont [6/16] 0.0, 128
    %314 = vxpose.xlu0.b32.cont [7/16] 0.0, 128
    %315 = vxpose.xlu0.b32.cont [8/16] 0.0, 128
    %316 = vxpose.xlu0.b32.cont [9/16] 0.0, 128
    %317 = vxpose.xlu0.b32.cont [10/16] 0.0, 128
    %318 = vxpose.xlu0.b32.cont [11/16] 0.0, 128
    %319 = vxpose.xlu0.b32.cont [12/16] 0.0, 128
    %320 = vxpose.xlu0.b32.cont [13/16] 0.0, 128
    %321 = vxpose.xlu0.b32.cont [14/16] 0.0, 128
    %322 = vxpose.xlu0.b32.cont [15/16] 0.0, 128
    %323 = vxpose.xlu0.b32.end [16/16] 0.0, 128
    %v324 = vpop.trf.xlu0
    %v325 = vpop.trf.xlu0
    %v326 = vpop.trf.xlu0
    %v327 = vpop.trf.xlu0
    %v328 = vpop.trf.xlu0
    %v329 = vpop.trf.xlu0
    %v330 = vpop.trf.xlu0
    %v331 = vpop.trf.xlu0
    %v332 = vpop.trf.xlu0
    %v333 = vpop.trf.xlu0
    %v334 = vpop.trf.xlu0
    %v335 = vpop.trf.xlu0
    %v336 = vpop.trf.xlu0
    %v337 = vpop.trf.xlu0
    %v338 = vpop.trf.xlu0
    %v339 = vpop.trf.xlu0
    %341 = vrot.lane.b32.xlu0 %v147, 64
    %v342 = vpop.permute.xlu0 %341
    %v345 = vsel %vm206, %v324, 0
    %v348 = vsel %vm206, %v325, 0
    %v351 = vsel %vm206, %v326, 0
    %v354 = vsel %vm206, %v327, 0
    %356 = vmatprep.subr.mxu0 0.0
    %357 = vmatpush1.msra.mxu0 %v342
    %358 = vmatprep.subr.mxu0 0.0
    %359 = vmatpush1.msra.mxu0 0.0
    %360 = vmatprep.subr.mxu0 0.0
    %361 = vmatpush1.msra.mxu0 0.0
    %362 = vmatprep.subr.mxu0 0.0
    %363 = vmatpush1.msra.mxu0 0.0
    %364 = vmatprep.subr.mxu0 0.0
    %365 = vmatpush1.msra.mxu0 0.0
    %366 = vmatprep.subr.mxu0 0.0
    %367 = vmatpush1.msra.mxu0 0.0
    %368 = vmatprep.subr.mxu0 0.0
    %369 = vmatpush1.msra.mxu0 0.0
    %370 = vmatprep.subr.mxu0 0.0
    %371 = vmatpush1.msra.mxu0 0.0
    %372 = vmatprep.subr.mxu0 0.0
    %373 = vmatpush1.msra.mxu0 0.0
    %374 = vmatprep.subr.mxu0 0.0
    %375 = vmatpush1.msra.mxu0 0.0
    %376 = vmatprep.subr.mxu0 0.0
    %377 = vmatpush1.msra.mxu0 0.0
    %378 = vmatprep.subr.mxu0 0.0
    %379 = vmatpush1.msra.mxu0 0.0
    %380 = vmatprep.subr.mxu0 0.0
    %381 = vmatpush1.msra.mxu0 0.0
    %382 = vmatprep.subr.mxu0 0.0
    %383 = vmatpush1.msra.mxu0 0.0
    %384 = vmatprep.subr.mxu0 0.0
    %385 = vmatpush1.msra.mxu0 0.0
    %386 = vmatprep.subr.mxu0 0.0
    %387 = vmatpush1.msra.mxu0 0.0
    %388 = vmatprep.subr.mxu0 0.0
    %389 = vmatpush1.msra.mxu0 0.0
    %390 = vmatprep.subr.mxu0 0.0
    %391 = vmatpush1.msra.mxu0 0.0
    %392 = vmatprep.subr.mxu0 0.0
    %393 = vmatpush1.msra.mxu0 0.0
    %394 = vmatprep.subr.mxu0 0.0
    %395 = vmatpush1.msra.mxu0 0.0
    %396 = vmatprep.subr.mxu0 0.0
    %397 = vmatpush1.msra.mxu0 0.0
    %398 = vmatprep.subr.mxu0 0.0
    %399 = vmatpush1.msra.mxu0 0.0
    %400 = vmatprep.subr.mxu0 0.0
    %401 = vmatpush1.msra.mxu0 0.0
    %402 = vmatprep.subr.mxu0 0.0
    %403 = vmatpush1.msra.mxu0 0.0
    %404 = vmatprep.subr.mxu0 0.0
    %405 = vmatpush1.msra.mxu0 0.0
    %406 = vmatprep.subr.mxu0 0.0
    %407 = vmatpush1.msra.mxu0 0.0
    %408 = vmatprep.subr.mxu0 0.0
    %409 = vmatpush1.msra.mxu0 0.0
    %410 = vmatprep.subr.mxu0 0.0
    %411 = vmatpush1.msra.mxu0 0.0
    %412 = vmatprep.subr.mxu0 0.0
    %413 = vmatpush1.msra.mxu0 0.0
    %414 = vmatprep.subr.mxu0 0.0
    %415 = vmatpush1.msra.mxu0 0.0
    %416 = vmatprep.subr.mxu0 0.0
    %417 = vmatpush1.msra.mxu0 0.0
    %418 = vmatprep.subr.mxu0 0.0
    %419 = vmatpush1.msra.mxu0 0.0
    %420 = vmatprep.mubr.f32.mxu0 0.0
    %421 = vmatmul.mubr.f32.gmra.mrb[0].mxu0 %v345
    %v422 = vpop.f32.mrb[0].mxu0
    %v423 = vadd.f32 0.0, %v422
    %v424 = vpop.f32.mrb[0].mxu0
    %425 = vmatprep.mubr.f32.mxu0 0.0
    %426 = vmatmul.mubr.f32.gmra.mrb[0].mxu0 %v348
    %v427 = vpop.f32.mrb[0].mxu0
    %v428 = vadd.f32 0.0, %v427
    %v429 = vpop.f32.mrb[0].mxu0
    %430 = vmatprep.mubr.f32.mxu0 0.0
    %431 = vmatmul.mubr.f32.gmra.mrb[0].mxu0 %v351
    %v432 = vpop.f32.mrb[0].mxu0
    %v433 = vadd.f32 0.0, %v432
    %v434 = vpop.f32.mrb[0].mxu0
    %435 = vmatprep.mubr.f32.mxu0 0.0
    %436 = vmatmul.mubr.f32.gmra.mrb[0].mxu0 %v354
    %v437 = vpop.f32.mrb[0].mxu0
    %v438 = vadd.f32 0.0, %v437
    %v439 = vpop.f32.mrb[0].mxu0
    %440 = vdwg.mxu0
    %v441 = vmul.f32 %v286, %v162
    %v442 = vmul.f32 %v291, %v163
    %v443 = vmul.f32 %v296, %v164
    %v444 = vmul.f32 %v301, %v165
    %v445 = vmul.f32 %v423, %v162
    %v446 = vmul.f32 %v428, %v163
    %v447 = vmul.f32 %v433, %v164
    %v448 = vmul.f32 %v438, %v165
    %v449 = vsel %vm33, %v160, 0
    %451 = vmatprep.subr.mxu0 0.0
    %452 = vmatpush1.msra.mxu0 %v441
    %453 = vmatprep.subr.mxu0 0.0
    %454 = vmatpush1.msra.mxu0 %v442
    %455 = vmatprep.subr.mxu0 0.0
    %456 = vmatpush1.msra.mxu0 %v443
    %457 = vmatprep.subr.mxu0 0.0
    %458 = vmatpush1.msra.mxu0 %v444
    %459 = vmatprep.subr.mxu0 0.0
    %460 = vmatpush1.msra.mxu0 0.0
    %461 = vmatprep.subr.mxu0 0.0
    %462 = vmatpush1.msra.mxu0 0.0
    %463 = vmatprep.subr.mxu0 0.0
    %464 = vmatpush1.msra.mxu0 0.0
    %465 = vmatprep.subr.mxu0 0.0
    %466 = vmatpush1.msra.mxu0 0.0
    %467 = vmatprep.subr.mxu0 0.0
    %468 = vmatpush1.msra.mxu0 0.0
    %469 = vmatprep.subr.mxu0 0.0
    %470 = vmatpush1.msra.mxu0 0.0
    %471 = vmatprep.subr.mxu0 0.0
    %472 = vmatpush1.msra.mxu0 0.0
    %473 = vmatprep.subr.mxu0 0.0
    %474 = vmatpush1.msra.mxu0 0.0
    %475 = vmatprep.subr.mxu0 0.0
    %476 = vmatpush1.msra.mxu0 0.0
    %477 = vmatprep.subr.mxu0 0.0
    %478 = vmatpush1.msra.mxu0 0.0
    %479 = vmatprep.subr.mxu0 0.0
    %480 = vmatpush1.msra.mxu0 0.0
    %481 = vmatprep.subr.mxu0 0.0
    %482 = vmatpush1.msra.mxu0 0.0
    %483 = vmatprep.subr.mxu0 0.0
    %484 = vmatpush1.msra.mxu0 0.0
    %485 = vmatprep.subr.mxu0 0.0
    %486 = vmatpush1.msra.mxu0 0.0
    %487 = vmatprep.subr.mxu0 0.0
    %488 = vmatpush1.msra.mxu0 0.0
    %489 = vmatprep.subr.mxu0 0.0
    %490 = vmatpush1.msra.mxu0 0.0
    %491 = vmatprep.subr.mxu0 0.0
    %492 = vmatpush1.msra.mxu0 0.0
    %493 = vmatprep.subr.mxu0 0.0
    %494 = vmatpush1.msra.mxu0 0.0
    %495 = vmatprep.subr.mxu0 0.0
    %496 = vmatpush1.msra.mxu0 0.0
    %497 = vmatprep.subr.mxu0 0.0
    %498 = vmatpush1.msra.mxu0 0.0
    %499 = vmatprep.subr.mxu0 0.0
    %500 = vmatpush1.msra.mxu0 0.0
    %501 = vmatprep.subr.mxu0 0.0
    %502 = vmatpush1.msra.mxu0 0.0
    %503 = vmatprep.subr.mxu0 0.0
    %504 = vmatpush1.msra.mxu0 0.0
    %505 = vmatprep.subr.mxu0 0.0
    %506 = vmatpush1.msra.mxu0 0.0
    %507 = vmatprep.subr.mxu0 0.0
    %508 = vmatpush1.msra.mxu0 0.0
    %509 = vmatprep.subr.mxu0 0.0
    %510 = vmatpush1.msra.mxu0 0.0
    %511 = vmatprep.subr.mxu0 0.0
    %512 = vmatpush1.msra.mxu0 0.0
    %513 = vmatprep.subr.mxu0 0.0
    %514 = vmatpush1.msra.mxu0 0.0
    %515 = vmatprep.mubr.f32.mxu0 0.0
    %516 = vmatmul.mubr.f32.gmra.mrb[0].mxu0 %v449
    %v517 = vpop.f32.mrb[0].mxu0
    %v518 = vadd.f32 0.0, %v517
    %v519 = vpop.f32.mrb[0].mxu0
    %520 = vdwg.mxu0
    %v521 = vsel %vm33, %v161, 0
    %523 = vmatprep.subr.mxu0 0.0
    %524 = vmatpush1.msra.mxu0 %v445
    %525 = vmatprep.subr.mxu0 0.0
    %526 = vmatpush1.msra.mxu0 %v446
    %527 = vmatprep.subr.mxu0 0.0
    %528 = vmatpush1.msra.mxu0 %v447
    %529 = vmatprep.subr.mxu0 0.0
    %530 = vmatpush1.msra.mxu0 %v448
    %531 = vmatprep.subr.mxu0 0.0
    %532 = vmatpush1.msra.mxu0 0.0
    %533 = vmatprep.subr.mxu0 0.0
    %534 = vmatpush1.msra.mxu0 0.0
    %535 = vmatprep.subr.mxu0 0.0
    %536 = vmatpush1.msra.mxu0 0.0
    %537 = vmatprep.subr.mxu0 0.0
    %538 = vmatpush1.msra.mxu0 0.0
    %539 = vmatprep.subr.mxu0 0.0
    %540 = vmatpush1.msra.mxu0 0.0
    %541 = vmatprep.subr.mxu0 0.0
    %542 = vmatpush1.msra.mxu0 0.0
    %543 = vmatprep.subr.mxu0 0.0
    %544 = vmatpush1.msra.mxu0 0.0
    %545 = vmatprep.subr.mxu0 0.0
    %546 = vmatpush1.msra.mxu0 0.0
    %547 = vmatprep.subr.mxu0 0.0
    %548 = vmatpush1.msra.mxu0 0.0
    %549 = vmatprep.subr.mxu0 0.0
    %550 = vmatpush1.msra.mxu0 0.0
    %551 = vmatprep.subr.mxu0 0.0
    %552 = vmatpush1.msra.mxu0 0.0
    %553 = vmatprep.subr.mxu0 0.0
    %554 = vmatpush1.msra.mxu0 0.0
    %555 = vmatprep.subr.mxu0 0.0
    %556 = vmatpush1.msra.mxu0 0.0
    %557 = vmatprep.subr.mxu0 0.0
    %558 = vmatpush1.msra.mxu0 0.0
    %559 = vmatprep.subr.mxu0 0.0
    %560 = vmatpush1.msra.mxu0 0.0
    %561 = vmatprep.subr.mxu0 0.0
    %562 = vmatpush1.msra.mxu0 0.0
    %563 = vmatprep.subr.mxu0 0.0
    %564 = vmatpush1.msra.mxu0 0.0
    %565 = vmatprep.subr.mxu0 0.0
    %566 = vmatpush1.msra.mxu0 0.0
    %567 = vmatprep.subr.mxu0 0.0
    %568 = vmatpush1.msra.mxu0 0.0
    %569 = vmatprep.subr.mxu0 0.0
    %570 = vmatpush1.msra.mxu0 0.0
    %571 = vmatprep.subr.mxu0 0.0
    %572 = vmatpush1.msra.mxu0 0.0
    %573 = vmatprep.subr.mxu0 0.0
    %574 = vmatpush1.msra.mxu0 0.0
    %575 = vmatprep.subr.mxu0 0.0
    %576 = vmatpush1.msra.mxu0 0.0
    %577 = vmatprep.subr.mxu0 0.0
    %578 = vmatpush1.msra.mxu0 0.0
    %579 = vmatprep.subr.mxu0 0.0
    %580 = vmatpush1.msra.mxu0 0.0
    %581 = vmatprep.subr.mxu0 0.0
    %582 = vmatpush1.msra.mxu0 0.0
    %583 = vmatprep.subr.mxu0 0.0
    %584 = vmatpush1.msra.mxu0 0.0
    %585 = vmatprep.subr.mxu0 0.0
    %586 = vmatpush1.msra.mxu0 0.0
    %587 = vmatprep.mubr.f32.mxu0 0.0
    %588 = vmatmul.mubr.f32.gmra.mrb[0].mxu0 %v521
    %v589 = vpop.f32.mrb[0].mxu0
    %v590 = vadd.f32 0.0, %v589
    %v591 = vpop.f32.mrb[0].mxu0
    %592 = vdwg.mxu0
    %vm593 = vcmask 523520
    %v594 = vsel %vm593, %v160, 0.0
    %v595 = vrot.slane %v594, 4
    %v596 = vadd.f32 %v594, %v595
    %v597 = vrot.slane %v596, 2
    %v598 = vadd.f32 %v596, %v597
    %v599 = vrot.slane %v598, 1
    %v600 = vadd.f32 %v598, %v599
    %v601 = vsel %vm593, %v161, 0.0
    %v602 = vrot.slane %v601, 4
    %v603 = vadd.f32 %v601, %v602
    %v604 = vrot.slane %v603, 2
    %v605 = vadd.f32 %v603, %v604
    %v606 = vrot.slane %v605, 1
    %v607 = vadd.f32 %v605, %v606
    %610 = vrot.lane.b32.xlu0 %v600, 96
    %v611 = vpop.permute.xlu0 %610
    %612 = vrot.lane.b32.xlu0 %v607, 96
    %v613 = vpop.permute.xlu0 %612
    %v616 = vmul.f32 %v160, %v611
    %v617 = vmul.f32 %v161, %v613
    %v619 = vsel %vm33, %v616, 0
    %v622 = vsel %vm33, %v617, 0
    %624 = vmatprep.subr.mxu0 0.0
    %625 = vmatpush1.msra.mxu0 %v162
    %626 = vmatprep.subr.mxu0 0.0
    %627 = vmatpush1.msra.mxu0 %v163
    %628 = vmatprep.subr.mxu0 0.0
    %629 = vmatpush1.msra.mxu0 %v164
    %630 = vmatprep.subr.mxu0 0.0
    %631 = vmatpush1.msra.mxu0 %v165
    %632 = vmatprep.subr.mxu0 0.0
    %633 = vmatpush1.msra.mxu0 0.0
    %634 = vmatprep.subr.mxu0 0.0
    %635 = vmatpush1.msra.mxu0 0.0
    %636 = vmatprep.subr.mxu0 0.0
    %637 = vmatpush1.msra.mxu0 0.0
    %638 = vmatprep.subr.mxu0 0.0
    %639 = vmatpush1.msra.mxu0 0.0
    %640 = vmatprep.subr.mxu0 0.0
    %641 = vmatpush1.msra.mxu0 0.0
    %642 = vmatprep.subr.mxu0 0.0
    %643 = vmatpush1.msra.mxu0 0.0
    %644 = vmatprep.subr.mxu0 0.0
    %645 = vmatpush1.msra.mxu0 0.0
    %646 = vmatprep.subr.mxu0 0.0
    %647 = vmatpush1.msra.mxu0 0.0
    %648 = vmatprep.subr.mxu0 0.0
    %649 = vmatpush1.msra.mxu0 0.0
    %650 = vmatprep.subr.mxu0 0.0
    %651 = vmatpush1.msra.mxu0 0.0
    %652 = vmatprep.subr.mxu0 0.0
    %653 = vmatpush1.msra.mxu0 0.0
    %654 = vmatprep.subr.mxu0 0.0
    %655 = vmatpush1.msra.mxu0 0.0
    %656 = vmatprep.subr.mxu0 0.0
    %657 = vmatpush1.msra.mxu0 0.0
    %658 = vmatprep.subr.mxu0 0.0
    %659 = vmatpush1.msra.mxu0 0.0
    %660 = vmatprep.subr.mxu0 0.0
    %661 = vmatpush1.msra.mxu0 0.0
    %662 = vmatprep.subr.mxu0 0.0
    %663 = vmatpush1.msra.mxu0 0.0
    %664 = vmatprep.subr.mxu0 0.0
    %665 = vmatpush1.msra.mxu0 0.0
    %666 = vmatprep.subr.mxu0 0.0
    %667 = vmatpush1.msra.mxu0 0.0
    %668 = vmatprep.subr.mxu0 0.0
    %669 = vmatpush1.msra.mxu0 0.0
    %670 = vmatprep.subr.mxu0 0.0
    %671 = vmatpush1.msra.mxu0 0.0
    %672 = vmatprep.subr.mxu0 0.0
    %673 = vmatpush1.msra.mxu0 0.0
    %674 = vmatprep.subr.mxu0 0.0
    %675 = vmatpush1.msra.mxu0 0.0
    %676 = vmatprep.subr.mxu0 0.0
    %677 = vmatpush1.msra.mxu0 0.0
    %678 = vmatprep.subr.mxu0 0.0
    %679 = vmatpush1.msra.mxu0 0.0
    %680 = vmatprep.subr.mxu0 0.0
    %681 = vmatpush1.msra.mxu0 0.0
    %682 = vmatprep.subr.mxu0 0.0
    %683 = vmatpush1.msra.mxu0 0.0
    %684 = vmatprep.subr.mxu0 0.0
    %685 = vmatpush1.msra.mxu0 0.0
    %686 = vmatprep.subr.mxu0 0.0
    %687 = vmatpush1.msra.mxu0 0.0
    %688 = vmatprep.mubr.f32.mxu0 0.0
    %689 = vmatmul.mubr.f32.gmra.mrb[0].mxu0 %v619
    %v690 = vpop.f32.mrb[0].mxu0
    %v691 = vadd.f32 1e-06, %v690
    %v692 = vpop.f32.mrb[0].mxu0
    %693 = vmatprep.mubr.f32.mxu0 0.0
    %694 = vmatmul.mubr.f32.gmra.mrb[0].mxu0 %v622
    %v695 = vpop.f32.mrb[0].mxu0
    %v696 = vadd.f32 1e-06, %v695
    %v697 = vpop.f32.mrb[0].mxu0
    %698 = vdwg.mxu0
    %v699 = vrcp.pop %v691
    %v700 = vrcp.pop %v696
    %v701 = vmul.f32 %v691, %v699
    %v702 = vmul.f32 %v696, %v700
    %v703 = vsub.f32 2.0, %v701
    %v704 = vsub.f32 2.0, %v702
    %v705 = vmul.f32 %v699, %v703
    %v706 = vmul.f32 %v700, %v704
    %v707 = vmul.f32 %v518, %v705
    %v708 = vmul.f32 %v590, %v706
    %v709 = vld [vmem:[%s2] sm:$0xff]
    %v710 = vld [vmem:[%s2 + $0x8] sm:$0xff]
    %v711 = vld [vmem:[%s2 + $0x10] sm:$0xff]
    %v712 = vld [vmem:[%s2 + $0x18] sm:$0xff]
    %v713 = vlaneseq
    %v714 = vshrl.u32 %v713, 7
    %v715 = vsub.s32 0, %v714
    %v716 = vrot.slane %v30, %v715
    %v718 = vsel %vm33, %v707, 0
    %v721 = vsel %vm33, %v708, 0
    %723 = vmatprep.subr.mxu0 0.0
    %724 = vmatpush1.msra.mxu0 %v709
    %725 = vmatprep.subr.mxu0 0.0
    %726 = vmatpush1.msra.mxu0 %v710
    %727 = vmatprep.subr.mxu0 0.0
    %728 = vmatpush1.msra.mxu0 %v711
    %729 = vmatprep.subr.mxu0 0.0
    %730 = vmatpush1.msra.mxu0 %v712
    %731 = vmatprep.subr.mxu0 0.0
    %732 = vmatpush1.msra.mxu0 0.0
    %733 = vmatprep.subr.mxu0 0.0
    %734 = vmatpush1.msra.mxu0 0.0
    %735 = vmatprep.subr.mxu0 0.0
    %736 = vmatpush1.msra.mxu0 0.0
    %737 = vmatprep.subr.mxu0 0.0
    %738 = vmatpush1.msra.mxu0 0.0
    %739 = vmatprep.subr.mxu0 0.0
    %740 = vmatpush1.msra.mxu0 0.0
    %741 = vmatprep.subr.mxu0 0.0
    %742 = vmatpush1.msra.mxu0 0.0
    %743 = vmatprep.subr.mxu0 0.0
    %744 = vmatpush1.msra.mxu0 0.0
    %745 = vmatprep.subr.mxu0 0.0
    %746 = vmatpush1.msra.mxu0 0.0
    %747 = vmatprep.subr.mxu0 0.0
    %748 = vmatpush1.msra.mxu0 0.0
    %749 = vmatprep.subr.mxu0 0.0
    %750 = vmatpush1.msra.mxu0 0.0
    %751 = vmatprep.subr.mxu0 0.0
    %752 = vmatpush1.msra.mxu0 0.0
    %753 = vmatprep.subr.mxu0 0.0
    %754 = vmatpush1.msra.mxu0 0.0
    %755 = vmatprep.subr.mxu0 0.0
    %756 = vmatpush1.msra.mxu0 0.0
    %757 = vmatprep.subr.mxu0 0.0
    %758 = vmatpush1.msra.mxu0 0.0
    %759 = vmatprep.subr.mxu0 0.0
    %760 = vmatpush1.msra.mxu0 0.0
    %761 = vmatprep.subr.mxu0 0.0
    %762 = vmatpush1.msra.mxu0 0.0
    %763 = vmatprep.subr.mxu0 0.0
    %764 = vmatpush1.msra.mxu0 0.0
    %765 = vmatprep.subr.mxu0 0.0
    %766 = vmatpush1.msra.mxu0 0.0
    %767 = vmatprep.subr.mxu0 0.0
    %768 = vmatpush1.msra.mxu0 0.0
    %769 = vmatprep.subr.mxu0 0.0
    %770 = vmatpush1.msra.mxu0 0.0
    %771 = vmatprep.subr.mxu0 0.0
    %772 = vmatpush1.msra.mxu0 0.0
    %773 = vmatprep.subr.mxu0 0.0
    %774 = vmatpush1.msra.mxu0 0.0
    %775 = vmatprep.subr.mxu0 0.0
    %776 = vmatpush1.msra.mxu0 0.0
    %777 = vmatprep.subr.mxu0 0.0
    %778 = vmatpush1.msra.mxu0 0.0
    %779 = vmatprep.subr.mxu0 0.0
    %780 = vmatpush1.msra.mxu0 0.0
    %781 = vmatprep.subr.mxu0 0.0
    %782 = vmatpush1.msra.mxu0 0.0
    %783 = vmatprep.subr.mxu0 0.0
    %784 = vmatpush1.msra.mxu0 0.0
    %785 = vmatprep.subr.mxu0 0.0
    %786 = vmatpush1.msra.mxu0 0.0
    %787 = vmatprep.mubr.f32.mxu0 0.0
    %788 = vmatmul.mubr.f32.gmra.mrb[0].mxu0 %v718
    %v789 = vpop.f32.mrb[0].mxu0
    %v790 = vadd.f32 %v716, %v789
    %v791 = vpop.f32.mrb[0].mxu0
    %792 = vmatprep.mubr.f32.mxu0 0.0
    %793 = vmatmul.mubr.f32.gmra.mrb[0].mxu0 %v721
    %v794 = vpop.f32.mrb[0].mxu0
    %v795 = vadd.f32 %v716, %v794
    %v796 = vpop.f32.mrb[0].mxu0
    %797 = vdwg.mxu0
    %v798 = vadd.f32 %v27, %v790
    %v799 = vadd.f32 %v28, %v795
    %v800 = vsel %vm33, %v798, 0.0
    %801 = vadd.xlane.f32.xlu0 %v800
    %v802 = vpop.xlane.xlu0 %801
    %v803 = vsel %vm33, %v799, 0.0
    %804 = vadd.xlane.f32.xlu0 %v803
    %v805 = vpop.xlane.xlu0 %804
    %v806 = vmul.f32 %v802, %v40
    %v807 = vmul.f32 %v805, %v40
    %v808 = vsub.f32 %v798, %v806
    %v809 = vsub.f32 %v799, %v807
    %v810 = vmul.f32 %v808, %v808
    %v811 = vmul.f32 %v809, %v809
    %v812 = vsel %vm33, %v810, 0.0
    %813 = vadd.xlane.f32.xlu0 %v812
    %v814 = vpop.xlane.xlu0 %813
    %v815 = vsel %vm33, %v811, 0.0
    %816 = vadd.xlane.f32.xlu0 %v815
    %v817 = vpop.xlane.xlu0 %816
    %v818 = vmul.f32 %v814, %v40
    %v819 = vmul.f32 %v817, %v40
    %v820 = vadd.f32 %v818, 1e-05
    %v821 = vadd.f32 %v819, 1e-05
    %v822 = vrsqrt.pop %v820
    %v823 = vrsqrt.pop %v821
    %v824 = vmul.f32 %v808, %v822
    %v825 = vmul.f32 %v809, %v823
    %v826 = vld [vmem:[%s3] sm:$0xff]
    %v827 = vld [vmem:[%s3 + $0x8] sm:$0xff]
    %v828 = vld [vmem:[%s3 + $0x10] sm:$0xff]
    %v829 = vld [vmem:[%s3 + $0x18] sm:$0xff]
    %v830 = vlaneseq
    %v831 = vshrl.u32 %v830, 7
    %v832 = vsub.s32 0, %v831
    %v833 = vrot.slane %v31, %v832
    %v835 = vsel %vm33, %v824, 0
    %v838 = vsel %vm33, %v825, 0
    %840 = vmatprep.subr.mxu0 0.0
    %841 = vmatpush1.msra.mxu0 %v826
    %842 = vmatprep.subr.mxu0 0.0
    %843 = vmatpush1.msra.mxu0 %v827
    %844 = vmatprep.subr.mxu0 0.0
    %845 = vmatpush1.msra.mxu0 %v828
    %846 = vmatprep.subr.mxu0 0.0
    %847 = vmatpush1.msra.mxu0 %v829
    %848 = vmatprep.subr.mxu0 0.0
    %849 = vmatpush1.msra.mxu0 0.0
    %850 = vmatprep.subr.mxu0 0.0
    %851 = vmatpush1.msra.mxu0 0.0
    %852 = vmatprep.subr.mxu0 0.0
    %853 = vmatpush1.msra.mxu0 0.0
    %854 = vmatprep.subr.mxu0 0.0
    %855 = vmatpush1.msra.mxu0 0.0
    %856 = vmatprep.subr.mxu0 0.0
    %857 = vmatpush1.msra.mxu0 0.0
    %858 = vmatprep.subr.mxu0 0.0
    %859 = vmatpush1.msra.mxu0 0.0
    %860 = vmatprep.subr.mxu0 0.0
    %861 = vmatpush1.msra.mxu0 0.0
    %862 = vmatprep.subr.mxu0 0.0
    %863 = vmatpush1.msra.mxu0 0.0
    %864 = vmatprep.subr.mxu0 0.0
    %865 = vmatpush1.msra.mxu0 0.0
    %866 = vmatprep.subr.mxu0 0.0
    %867 = vmatpush1.msra.mxu0 0.0
    %868 = vmatprep.subr.mxu0 0.0
    %869 = vmatpush1.msra.mxu0 0.0
    %870 = vmatprep.subr.mxu0 0.0
    %871 = vmatpush1.msra.mxu0 0.0
    %872 = vmatprep.subr.mxu0 0.0
    %873 = vmatpush1.msra.mxu0 0.0
    %874 = vmatprep.subr.mxu0 0.0
    %875 = vmatpush1.msra.mxu0 0.0
    %876 = vmatprep.subr.mxu0 0.0
    %877 = vmatpush1.msra.mxu0 0.0
    %878 = vmatprep.subr.mxu0 0.0
    %879 = vmatpush1.msra.mxu0 0.0
    %880 = vmatprep.subr.mxu0 0.0
    %881 = vmatpush1.msra.mxu0 0.0
    %882 = vmatprep.subr.mxu0 0.0
    %883 = vmatpush1.msra.mxu0 0.0
    %884 = vmatprep.subr.mxu0 0.0
    %885 = vmatpush1.msra.mxu0 0.0
    %886 = vmatprep.subr.mxu0 0.0
    %887 = vmatpush1.msra.mxu0 0.0
    %888 = vmatprep.subr.mxu0 0.0
    %889 = vmatpush1.msra.mxu0 0.0
    %890 = vmatprep.subr.mxu0 0.0
    %891 = vmatpush1.msra.mxu0 0.0
    %892 = vmatprep.subr.mxu0 0.0
    %893 = vmatpush1.msra.mxu0 0.0
    %894 = vmatprep.subr.mxu0 0.0
    %895 = vmatpush1.msra.mxu0 0.0
    %896 = vmatprep.subr.mxu0 0.0
    %897 = vmatpush1.msra.mxu0 0.0
    %898 = vmatprep.subr.mxu0 0.0
    %899 = vmatpush1.msra.mxu0 0.0
    %900 = vmatprep.subr.mxu0 0.0
    %901 = vmatpush1.msra.mxu0 0.0
    %902 = vmatprep.subr.mxu0 0.0
    %903 = vmatpush1.msra.mxu0 0.0
    %904 = vmatprep.mubr.f32.mxu0 0.0
    %905 = vmatmul.mubr.f32.gmra.mrb[0].mxu0 %v835
    %v906 = vpop.f32.mrb[0].mxu0
    %v907 = vadd.f32 %v833, %v906
    %v908 = vpop.f32.mrb[0].mxu0
    %909 = vmatprep.mubr.f32.mxu0 0.0
    %910 = vmatmul.mubr.f32.gmra.mrb[0].mxu0 %v838
    %v911 = vpop.f32.mrb[0].mxu0
    %v912 = vadd.f32 %v833, %v911
    %v913 = vpop.f32.mrb[0].mxu0
    %914 = vdwg.mxu0
    %v915 = vmul.f32 %v907, 0.5
    %v916 = vmul.f32 %v912, 0.5
    %v917 = vmul.f32 %v907, 0.044715
    %v918 = vmul.f32 %v912, 0.044715
    %v919 = vmul.f32 %v917, %v907
    %v920 = vmul.f32 %v918, %v912
    %v921 = vmul.f32 %v919, %v907
    %v922 = vmul.f32 %v920, %v912
    %v923 = vadd.f32 %v907, %v921
    %v924 = vadd.f32 %v912, %v922
    %v925 = vmul.f32 %v923, 0.7978846
    %v926 = vmul.f32 %v924, 0.7978846
    %v927 = vtanh.pop %v925
    %v928 = vtanh.pop %v926
    %v929 = vadd.f32 %v927, 1.0
    %v930 = vadd.f32 %v928, 1.0
    %v931 = vmul.f32 %v915, %v929
    %v932 = vmul.f32 %v916, %v930
    %v933 = vld [vmem:[%s4] sm:$0xff]
    %v934 = vld [vmem:[%s4 + $0x8] sm:$0xff]
    %v935 = vld [vmem:[%s4 + $0x10] sm:$0xff]
    %v936 = vld [vmem:[%s4 + $0x18] sm:$0xff]
    %v937 = vld [vmem:[%s4 + $0x20] sm:$0xff]
    %v938 = vld [vmem:[%s4 + $0x28] sm:$0xff]
    %v939 = vld [vmem:[%s4 + $0x30] sm:$0xff]
    %v940 = vld [vmem:[%s4 + $0x38] sm:$0xff]
    %v941 = vld [vmem:[%s4 + $0x40] sm:$0xff]
    %v942 = vld [vmem:[%s4 + $0x48] sm:$0xff]
    %v943 = vld [vmem:[%s4 + $0x50] sm:$0xff]
    %v944 = vld [vmem:[%s4 + $0x58] sm:$0xff]
    %v945 = vld [vmem:[%s4 + $0x60] sm:$0xff]
    %v946 = vld [vmem:[%s4 + $0x68] sm:$0xff]
    %v947 = vld [vmem:[%s4 + $0x70] sm:$0xff]
    %v948 = vld [vmem:[%s4 + $0x78] sm:$0xff]
    %v949 = vlaneseq
    %v950 = vshrl.u32 %v949, 7
    %v951 = vsub.s32 0, %v950
    %v952 = vrot.slane %v32, %v951
    %953 = vmatprep.subr.mxu0 0.0
    %954 = vmatpush1.msra.mxu0 %v933
    %955 = vmatprep.subr.mxu0 0.0
    %956 = vmatpush1.msra.mxu0 %v934
    %957 = vmatprep.subr.mxu0 0.0
    %958 = vmatpush1.msra.mxu0 %v935
    %959 = vmatprep.subr.mxu0 0.0
    %960 = vmatpush1.msra.mxu0 %v936
    %961 = vmatprep.subr.mxu0 0.0
    %962 = vmatpush1.msra.mxu0 %v937
    %963 = vmatprep.subr.mxu0 0.0
    %964 = vmatpush1.msra.mxu0 %v938
    %965 = vmatprep.subr.mxu0 0.0
    %966 = vmatpush1.msra.mxu0 %v939
    %967 = vmatprep.subr.mxu0 0.0
    %968 = vmatpush1.msra.mxu0 %v940
    %969 = vmatprep.subr.mxu0 0.0
    %970 = vmatpush1.msra.mxu0 %v941
    %971 = vmatprep.subr.mxu0 0.0
    %972 = vmatpush1.msra.mxu0 %v942
    %973 = vmatprep.subr.mxu0 0.0
    %974 = vmatpush1.msra.mxu0 %v943
    %975 = vmatprep.subr.mxu0 0.0
    %976 = vmatpush1.msra.mxu0 %v944
    %977 = vmatprep.subr.mxu0 0.0
    %978 = vmatpush1.msra.mxu0 %v945
    %979 = vmatprep.subr.mxu0 0.0
    %980 = vmatpush1.msra.mxu0 %v946
    %981 = vmatprep.subr.mxu0 0.0
    %982 = vmatpush1.msra.mxu0 %v947
    %983 = vmatprep.subr.mxu0 0.0
    %984 = vmatpush1.msra.mxu0 %v948
    %985 = vmatprep.subr.mxu0 0.0
    %986 = vmatpush1.msra.mxu0 0.0
    %987 = vmatprep.subr.mxu0 0.0
    %988 = vmatpush1.msra.mxu0 0.0
    %989 = vmatprep.subr.mxu0 0.0
    %990 = vmatpush1.msra.mxu0 0.0
    %991 = vmatprep.subr.mxu0 0.0
    %992 = vmatpush1.msra.mxu0 0.0
    %993 = vmatprep.subr.mxu0 0.0
    %994 = vmatpush1.msra.mxu0 0.0
    %995 = vmatprep.subr.mxu0 0.0
    %996 = vmatpush1.msra.mxu0 0.0
    %997 = vmatprep.subr.mxu0 0.0
    %998 = vmatpush1.msra.mxu0 0.0
    %999 = vmatprep.subr.mxu0 0.0
    %1000 = vmatpush1.msra.mxu0 0.0
    %1001 = vmatprep.subr.mxu0 0.0
    %1002 = vmatpush1.msra.mxu0 0.0
    %1003 = vmatprep.subr.mxu0 0.0
    %1004 = vmatpush1.msra.mxu0 0.0
    %1005 = vmatprep.subr.mxu0 0.0
    %1006 = vmatpush1.msra.mxu0 0.0
    %1007 = vmatprep.subr.mxu0 0.0
    %1008 = vmatpush1.msra.mxu0 0.0
    %1009 = vmatprep.subr.mxu0 0.0
    %1010 = vmatpush1.msra.mxu0 0.0
    %1011 = vmatprep.subr.mxu0 0.0
    %1012 = vmatpush1.msra.mxu0 0.0
    %1013 = vmatprep.subr.mxu0 0.0
    %1014 = vmatpush1.msra.mxu0 0.0
    %1015 = vmatprep.subr.mxu0 0.0
    %1016 = vmatpush1.msra.mxu0 0.0
    %1017 = vmatprep.mubr.f32.mxu0 0.0
    %1018 = vmatmul.mubr.f32.gmra.mrb[0].mxu0 %v931
    %v1019 = vpop.f32.mrb[0].mxu0
    %v1020 = vadd.f32 %v952, %v1019
    %v1021 = vpop.f32.mrb[0].mxu0
    %1022 = vmatprep.mubr.f32.mxu0 0.0
    %1023 = vmatmul.mubr.f32.gmra.mrb[0].mxu0 %v932
    %v1024 = vpop.f32.mrb[0].mxu0
    %v1025 = vadd.f32 %v952, %v1024
    %v1026 = vpop.f32.mrb[0].mxu0
    %1027 = vdwg.mxu0
    %v1028 = vadd.f32 %v798, %v1020
    %v1029 = vadd.f32 %v799, %v1025
    %1030 = vst.msk [vmem:[#allocation2] sm:$0xff] %vm33, %v1028
    %1031 = vst.msk [vmem:[#allocation2 + $0x8] sm:$0xff] %vm33, %v1029
    // Predicated region
    $region30: #{tpu_custom_call.1} parent=1 // pred_check
      _
    $region31: #{tpu_custom_call.1} parent=1 // pred_check_branch
      %1033 = sbr.rel (0) target = $region33
    $region32: #{tpu_custom_call.1} parent=1 // pred_region
      %s1035 = ssub.s32 256, 256
      %1036 = vsyncadd [#allocation3], %s1035
      %s1037 = sshll.u32 [#allocation2], 4
      %s1038 = int_to_ptr.vmem [resolvable:$true] %s1037
      %1043 = dma.vmem_to_hbm [thread:$0]  %s1038, 256, %s7, [#allocation3], 128, 128, 8
    $region33: #{tpu_custom_call.1} parent=1 // pred_fallthru
      _
    // Predicated region
    $region34: #{tpu_custom_call.1} parent=1 // pred_check
      _
    $region35: #{tpu_custom_call.1} parent=1 // pred_check_branch
      %1045 = sbr.rel (0) target = $region37
    $region36: #{tpu_custom_call.1} parent=1 // pred_region
      %1046 = dma.done [#allocation3], 256
    $region37: #{tpu_custom_call.1} parent=1 // pred_fallthru
      _
    %1047 = vsyncpa [#allocation3], 1

</llo_original>
